<compile_context>
chip_gen: v6e
topology: v6e:2x2x1
jax: 0.10.0
libtpu: 0.0.40
codegen_flags: <defaults>
</compile_context>

<pallas_src>
import functools

import jax
import jax.numpy as jnp
from jax import lax
from jax.experimental import pallas as pl
from jax.experimental.pallas import tpu as pltpu

NEG_SLOPE = 0.2
DROPOUT_P = 0.2
_VMEM_LIMIT_BYTES = 32 * 1024 * 1024  # safe scoped-VMEM budget on v5e/v6e/v7x


def _round_up(x, m):
    return ((x + m - 1) // m) * m


def _pad2d(x, rows, cols):
    r, c = x.shape
    if r == rows and c == cols:
        return x
    return jnp.pad(x, ((0, rows - r), (0, cols - c)))


def _hash_bits(seed_u32, draw, shape):
    """Portable counter-based uint32 random bits (murmur-style finalizer).

    Pure jnp integer ops -> lowers on TPU Mosaic (VPU) and in interpret mode;
    deterministic per (seed, draw, element index)."""
    rows = lax.broadcasted_iota(jnp.int32, shape, 0)
    cols = lax.broadcasted_iota(jnp.int32, shape, 1)
    x = (rows * shape[1] + cols).astype(jnp.uint32)
    x = x ^ (seed_u32 * jnp.uint32(0x9E3779B9)
             + jnp.uint32(draw + 1) * jnp.uint32(0x85EBCA6B))
    x = x ^ (x >> 16)
    x = x * jnp.uint32(0x7FEB352D)
    x = x ^ (x >> 15)
    x = x * jnp.uint32(0x846CA68B)
    x = x ^ (x >> 16)
    return x


def _network_kernel(seed_ref, adj_ref, users_ref, prod_ref, w_ref, b_ref,
                    u_out_ref, p_out_ref, *, negative_slope, dropout_p, training):
    """Fused forward: both sides of layer 1 and layer 2 + LeakyReLU + dropout."""
    adj = adj_ref[...]          # [U, P]  (compute dtype)
    w = w_ref[...]              # [D, D]  (compute dtype)
    b = b_ref[...]              # [1, D]  (f32)

    use_dropout = training and dropout_p > 0.0
    if use_dropout:
        seed_u32 = (seed_ref[0] + pl.program_id(0)).astype(jnp.uint32)
    inv_keep = 1.0 / (1.0 - dropout_p) if dropout_p < 1.0 else 0.0
    thr = jnp.uint32(min(int(dropout_p * (2.0 ** 32)), 2 ** 32 - 1))

    def act_drop(h, draw):
        a = jnp.where(h >= 0, h, negative_slope * h)            # LeakyReLU (VPU)
        if use_dropout:
            bits = _hash_bits(seed_u32, draw, a.shape)
            a = jnp.where(bits >= thr, a * inv_keep, 0.0)        # inverted dropout
        return a

    def side(emb, *, transpose_adj):
        """(A @ E) @ W + b, transposing A on-chip when transpose_adj."""
        if transpose_adj:
            m, k = adj.shape[1], adj.shape[0]
        else:
            m, k = adj.shape
        emb = emb.astype(adj.dtype)
        if k <= m:
            # Re-associate as A @ (E @ W): second matmul FLOPs drop from
            # m*D^2 to k*D^2 and the live intermediate shrinks to [k, D].
            ew = jnp.dot(emb, w, preferred_element_type=jnp.float32).astype(adj.dtype)
            if transpose_adj:
                h = lax.dot_general(adj, ew, (((0,), (0,)), ((), ())),
                                    preferred_element_type=jnp.float32)
            else:
                h = jnp.dot(adj, ew, preferred_element_type=jnp.float32)
        else:
            if transpose_adj:
                agg = lax.dot_general(adj, emb, (((0,), (0,)), ((), ())),
                                      preferred_element_type=jnp.float32)
            else:
                agg = jnp.dot(adj, emb, preferred_element_type=jnp.float32)
            h = jnp.dot(agg.astype(w.dtype), w, preferred_element_type=jnp.float32)
        return h + b

    # ---- layer 1 + LeakyReLU + dropout (u1/p1 never leave VMEM) ----
    u1 = act_drop(side(prod_ref[...], transpose_adj=False), 0)   # [U, D] f32
    p1 = act_drop(side(users_ref[...], transpose_adj=True), 1)   # [P, D] f32
    # ---- layer 2 + LeakyReLU + dropout ----
    u2 = act_drop(side(p1, transpose_adj=False), 2)
    p2 = act_drop(side(u1, transpose_adj=True), 3)

    u_out_ref[...] = u2.astype(u_out_ref.dtype)
    p_out_ref[...] = p2.astype(p_out_ref.dtype)


def free_embedding_network(items, neighbors, weight, bias, *,
                           negative_slope=NEG_SLOPE, dropout_p=DROPOUT_P,
                           training=False, seed=0, compute_dtype=jnp.float32):
    """Forward pass of FreeEmbeddingNetwork fused into a single Pallas kernel."""
    users, products = items
    U, D = users.shape
    P = products.shape[0]
    assert products.shape == (P, D)
    assert neighbors.shape == (U, P)
    assert weight.shape == (D, D)
    assert bias.shape[-1] == D

    # Lane/sublane-aligned padding: user rows -> mult of 8, product rows (the
    # adjacency's last/lane dim) -> mult of 128, hidden dim -> mult of 128
    # (lane-dense loads & unmasked vst stores).  Zero padding is exact: padded
    # adjacency rows/cols are zero so padded embeddings never contribute.
    Up, Pp, Dp = _round_up(U, 8), _round_up(P, 128), _round_up(D, 128)

    adj_p = _pad2d(neighbors.astype(compute_dtype), Up, Pp)
    usr_p = _pad2d(users.astype(compute_dtype), Up, Dp)
    prd_p = _pad2d(products.astype(compute_dtype), Pp, Dp)
    w_p = _pad2d(weight.astype(compute_dtype), Dp, Dp)
    b_p = _pad2d(bias.reshape(1, D).astype(jnp.float32), 1, Dp)
    seed_arr = jnp.asarray([seed], dtype=jnp.int32)

    # Whole-network-in-VMEM footprint check (x2 for pipeline double-buffering,
    # plus f32 intermediates).  TODO(synk): tiled/pipelined variant for graphs
    # beyond this budget.
    esz = jnp.dtype(compute_dtype).itemsize
    footprint = (2 * ((Up * Pp + (Up + Pp) * Dp + Dp * Dp) * esz + Dp * 4
                      + (Up + Pp) * Dp * 4)
                 + 2 * (Up + Pp) * Dp * 4)
    assert footprint < _VMEM_LIMIT_BYTES - (4 << 20), (
        f"operands too large ({footprint} B) for the single-block fused kernel")

    kernel = functools.partial(
        _network_kernel, negative_slope=negative_slope,
        dropout_p=dropout_p, training=training)

    grid_spec = pltpu.PrefetchScalarGridSpec(
        num_scalar_prefetch=1,
        grid=(1,),
        in_specs=[
            pl.BlockSpec((Up, Pp), lambda i, seed: (0, 0)),   # adjacency
            pl.BlockSpec((Up, Dp), lambda i, seed: (0, 0)),   # user embeddings
            pl.BlockSpec((Pp, Dp), lambda i, seed: (0, 0)),   # product embeddings
            pl.BlockSpec((Dp, Dp), lambda i, seed: (0, 0)),   # shared weight
            pl.BlockSpec((1, Dp), lambda i, seed: (0, 0)),    # shared bias
        ],
        out_specs=[
            pl.BlockSpec((Up, Dp), lambda i, seed: (0, 0)),   # users out
            pl.BlockSpec((Pp, Dp), lambda i, seed: (0, 0)),   # products out
        ],
    )

    u2, p2 = pl.pallas_call(
        kernel,
        grid_spec=grid_spec,
        out_shape=(jax.ShapeDtypeStruct((Up, Dp), jnp.float32),
                   jax.ShapeDtypeStruct((Pp, Dp), jnp.float32)),
        compiler_params=pltpu.CompilerParams(
            dimension_semantics=("arbitrary",),
            vmem_limit_bytes=_VMEM_LIMIT_BYTES),
    )(seed_arr, adj_p, usr_p, prd_p, w_p, b_p)

    return u2[:U, :D], p2[:P, :D]


def _reference(items, neighbors, weight, bias, negative_slope=NEG_SLOPE):
    """Pure-JAX reference (eval mode: dropout = identity)."""
    def side(a, e):
        h = (a @ e) @ weight + bias
        return jnp.where(h >= 0, h, negative_slope * h)
    users, products = items
    u1 = side(neighbors, products)
    p1 = side(neighbors.T, users)
    u2 = side(neighbors, p1)
    p2 = side(neighbors.T, u1)
    return u2, p2


if __name__ == "__main__":
    key = jax.random.PRNGKey(0)
    k_u, k_p, k_a, k_w, k_b = jax.random.split(key, 5)

    # Small shapes; D=128 keeps the hidden dim lane-dense on TPU.
    U, P, D = 16, 8, 128

    users = jax.random.normal(k_u, (U, D), dtype=jnp.float32)
    products = jax.random.normal(k_p, (P, D), dtype=jnp.float32)

    # Dense row-normalised bipartite adjacency.
    adj = (jax.random.uniform(k_a, (U, P), dtype=jnp.float32) > 0.5).astype(jnp.float32)
    adj = adj / jnp.clip(adj.sum(axis=1, keepdims=True), 1.0, None)

    weight = jax.random.normal(k_w, (D, D), dtype=jnp.float32) * (1.0 / jnp.sqrt(D))
    bias = jax.random.normal(k_b, (D,), dtype=jnp.float32) * 0.01

    # --- Eval mode (dropout = identity): deterministic, checked against reference.
    u_out, p_out = free_embedding_network((users, products), adj, weight, bias,
                                          training=False)
    u_out = jax.block_until_ready(u_out)
    p_out = jax.block_until_ready(p_out)

    u_ref, p_ref = _reference((users, products), adj, weight, bias)
    assert u_out.shape == (U, D) and p_out.shape == (P, D)
    assert jnp.allclose(u_out, u_ref, atol=1e-3, rtol=1e-3)
    assert jnp.allclose(p_out, p_ref, atol=1e-3, rtol=1e-3)

    # --- Training mode smoke test (dropout path): runs, finite, produces zeros.
    u_tr, p_tr = free_embedding_network((users, products), adj, weight, bias,
                                        training=True, seed=123)
    u_tr = jax.block_until_ready(u_tr)
    p_tr = jax.block_until_ready(p_tr)
    assert u_tr.shape == (U, D) and p_tr.shape == (P, D)
    assert bool(jnp.all(jnp.isfinite(u_tr))) and bool(jnp.all(jnp.isfinite(p_tr)))
    assert float(jnp.mean(u_tr == 0.0)) > 0.0  # dropout actually dropped something

    print("KERNEL_OK")
</pallas_src>

<mosaic_0001>
module attributes {stable_mosaic.version = 11 : i64} {
  func.func @_network_kernel(%arg0: i32, %arg1: memref<1xi32, #tpu.memory_space<smem>>, %arg2: memref<16x128xf32, #tpu.memory_space<vmem>>, %arg3: memref<16x128xf32, #tpu.memory_space<vmem>>, %arg4: memref<128x128xf32, #tpu.memory_space<vmem>>, %arg5: memref<128x128xf32, #tpu.memory_space<vmem>>, %arg6: memref<1x128xf32, #tpu.memory_space<vmem>>, %arg7: memref<16x128xf32, #tpu.memory_space<vmem>>, %arg8: memref<128x128xf32, #tpu.memory_space<vmem>>) attributes {dimension_semantics = [#tpu.dimension_semantics<arbitrary>], iteration_bounds = array<i64: 1>, scalar_prefetch = 1 : i64, scratch_operands = 0 : i64, tpu.core_type = #tpu.core_type<tc>, window_params = [{pipeline_mode = #tpu.pipeline_mode<synchronous>, transform_indices = @transform_0, window_bounds = array<i64: 16, 128>}, {pipeline_mode = #tpu.pipeline_mode<synchronous>, transform_indices = @transform_1, window_bounds = array<i64: 16, 128>}, {pipeline_mode = #tpu.pipeline_mode<synchronous>, transform_indices = @transform_2, window_bounds = array<i64: 128, 128>}, {pipeline_mode = #tpu.pipeline_mode<synchronous>, transform_indices = @transform_3, window_bounds = array<i64: 128, 128>}, {pipeline_mode = #tpu.pipeline_mode<synchronous>, transform_indices = @transform_4, window_bounds = array<i64: 1, 128>}, {pipeline_mode = #tpu.pipeline_mode<synchronous>, transform_indices = @transform_5, window_bounds = array<i64: 16, 128>}, {pipeline_mode = #tpu.pipeline_mode<synchronous>, transform_indices = @transform_6, window_bounds = array<i64: 128, 128>}]} {
    %c0 = arith.constant 0 : index
    %c0_0 = arith.constant 0 : index
    %0 = vector.load %arg2[%c0, %c0_0] : memref<16x128xf32, #tpu.memory_space<vmem>>, vector<16x128xf32>
    %c0_1 = arith.constant 0 : index
    %c0_2 = arith.constant 0 : index
    %1 = vector.load %arg5[%c0_1, %c0_2] : memref<128x128xf32, #tpu.memory_space<vmem>>, vector<128x128xf32>
    %c0_3 = arith.constant 0 : index
    %c0_4 = arith.constant 0 : index
    %2 = vector.load %arg6[%c0_3, %c0_4] : memref<1x128xf32, #tpu.memory_space<vmem>>, vector<1x128xf32>
    %c0_5 = arith.constant 0 : index
    %c0_6 = arith.constant 0 : index
    %3 = vector.load %arg4[%c0_5, %c0_6] : memref<128x128xf32, #tpu.memory_space<vmem>>, vector<128x128xf32>
    %cst = arith.constant dense<0.000000e+00> : vector<16x128xf32>
    %4 = tpu.matmul %0, %3, %cst {dimension_numbers = #tpu.dot_dimension_numbers<[1], [0], [0], [1], [0, 0, 1, 1], [], []>} : vector<16x128xf32>, vector<128x128xf32>, vector<16x128xf32> -> vector<16x128xf32>
    %cst_7 = arith.constant dense<0.000000e+00> : vector<16x128xf32>
    %5 = tpu.matmul %4, %1, %cst_7 {dimension_numbers = #tpu.dot_dimension_numbers<[1], [0], [0], [1], [0, 0, 1, 1], [], []>} : vector<16x128xf32>, vector<128x128xf32>, vector<16x128xf32> -> vector<16x128xf32>
    %6 = vector.broadcast %2 : vector<1x128xf32> to vector<16x128xf32>
    %7 = arith.addf %5, %6 : vector<16x128xf32>
    %cst_8 = arith.constant 0.000000e+00 : f32
    %8 = vector.broadcast %cst_8 : f32 to vector<16x128xf32>
    %9 = arith.cmpf oge, %7, %8 : vector<16x128xf32>
    %cst_9 = arith.constant 2.000000e-01 : f32
    %10 = vector.broadcast %cst_9 : f32 to vector<16x128xf32>
    %11 = arith.mulf %10, %7 : vector<16x128xf32>
    %12 = arith.select %9, %7, %11 : vector<16x128xi1>, vector<16x128xf32>
    %c0_10 = arith.constant 0 : index
    %c0_11 = arith.constant 0 : index
    %13 = vector.load %arg3[%c0_10, %c0_11] : memref<16x128xf32, #tpu.memory_space<vmem>>, vector<16x128xf32>
    %cst_12 = arith.constant dense<0.000000e+00> : vector<16x128xf32>
    %14 = tpu.matmul %13, %1, %cst_12 {dimension_numbers = #tpu.dot_dimension_numbers<[1], [0], [0], [1], [0, 0, 1, 1], [], []>} : vector<16x128xf32>, vector<128x128xf32>, vector<16x128xf32> -> vector<16x128xf32>
    %cst_13 = arith.constant dense<0.000000e+00> : vector<128x128xf32>
    %15 = tpu.matmul %0, %14, %cst_13 {dimension_numbers = #tpu.dot_dimension_numbers<[0], [0], [1], [1], [0, 1, 1, 1], [], []>} : vector<16x128xf32>, vector<16x128xf32>, vector<128x128xf32> -> vector<128x128xf32>
    %16 = vector.broadcast %2 : vector<1x128xf32> to vector<128x128xf32>
    %17 = arith.addf %15, %16 : vector<128x128xf32>
    %cst_14 = arith.constant 0.000000e+00 : f32
    %18 = vector.broadcast %cst_14 : f32 to vector<128x128xf32>
    %19 = arith.cmpf oge, %17, %18 : vector<128x128xf32>
    %cst_15 = arith.constant 2.000000e-01 : f32
    %20 = vector.broadcast %cst_15 : f32 to vector<128x128xf32>
    %21 = arith.mulf %20, %17 : vector<128x128xf32>
    %22 = arith.select %19, %17, %21 : vector<128x128xi1>, vector<128x128xf32>
    %cst_16 = arith.constant dense<0.000000e+00> : vector<16x128xf32>
    %23 = tpu.matmul %0, %22, %cst_16 {dimension_numbers = #tpu.dot_dimension_numbers<[1], [0], [0], [1], [0, 0, 1, 1], [], []>} : vector<16x128xf32>, vector<128x128xf32>, vector<16x128xf32> -> vector<16x128xf32>
    %cst_17 = arith.constant dense<0.000000e+00> : vector<16x128xf32>
    %24 = tpu.matmul %23, %1, %cst_17 {dimension_numbers = #tpu.dot_dimension_numbers<[1], [0], [0], [1], [0, 0, 1, 1], [], []>} : vector<16x128xf32>, vector<128x128xf32>, vector<16x128xf32> -> vector<16x128xf32>
    %25 = vector.broadcast %2 : vector<1x128xf32> to vector<16x128xf32>
    %26 = arith.addf %24, %25 : vector<16x128xf32>
    %cst_18 = arith.constant 0.000000e+00 : f32
    %27 = vector.broadcast %cst_18 : f32 to vector<16x128xf32>
    %28 = arith.cmpf oge, %26, %27 : vector<16x128xf32>
    %cst_19 = arith.constant 2.000000e-01 : f32
    %29 = vector.broadcast %cst_19 : f32 to vector<16x128xf32>
    %30 = arith.mulf %29, %26 : vector<16x128xf32>
    %31 = arith.select %28, %26, %30 : vector<16x128xi1>, vector<16x128xf32>
    %cst_20 = arith.constant dense<0.000000e+00> : vector<16x128xf32>
    %32 = tpu.matmul %12, %1, %cst_20 {dimension_numbers = #tpu.dot_dimension_numbers<[1], [0], [0], [1], [0, 0, 1, 1], [], []>} : vector<16x128xf32>, vector<128x128xf32>, vector<16x128xf32> -> vector<16x128xf32>
    %cst_21 = arith.constant dense<0.000000e+00> : vector<128x128xf32>
    %33 = tpu.matmul %0, %32, %cst_21 {dimension_numbers = #tpu.dot_dimension_numbers<[0], [0], [1], [1], [0, 1, 1, 1], [], []>} : vector<16x128xf32>, vector<16x128xf32>, vector<128x128xf32> -> vector<128x128xf32>
    %34 = vector.broadcast %2 : vector<1x128xf32> to vector<128x128xf32>
    %35 = arith.addf %33, %34 : vector<128x128xf32>
    %cst_22 = arith.constant 0.000000e+00 : f32
    %36 = vector.broadcast %cst_22 : f32 to vector<128x128xf32>
    %37 = arith.cmpf oge, %35, %36 : vector<128x128xf32>
    %cst_23 = arith.constant 2.000000e-01 : f32
    %38 = vector.broadcast %cst_23 : f32 to vector<128x128xf32>
    %39 = arith.mulf %38, %35 : vector<128x128xf32>
    %40 = arith.select %37, %35, %39 : vector<128x128xi1>, vector<128x128xf32>
    %c0_24 = arith.constant 0 : index
    %c0_25 = arith.constant 0 : index
    %41 = vector.load %arg7[%c0_24, %c0_25] : memref<16x128xf32, #tpu.memory_space<vmem>>, vector<16x128xf32>
    tpu.vector_store %arg7[%c0_24, %c0_25], %31 {strides = array<i32>} : memref<16x128xf32, #tpu.memory_space<vmem>>, vector<16x128xf32>,
    %c0_26 = arith.constant 0 : index
    %c0_27 = arith.constant 0 : index
    %42 = vector.load %arg8[%c0_26, %c0_27] : memref<128x128xf32, #tpu.memory_space<vmem>>, vector<128x128xf32>
    tpu.vector_store %arg8[%c0_26, %c0_27], %40 {strides = array<i32>} : memref<128x128xf32, #tpu.memory_space<vmem>>, vector<128x128xf32>,
    return
  }
  func.func @transform_0(%arg0: i32, %arg1: memref<1xi32, #tpu.memory_space<smem>>) -> (i32, i32) {
    %c0_i32 = arith.constant 0 : i32
    %c0_i32_0 = arith.constant 0 : i32
    %c0_i32_1 = arith.constant 0 : i32
    return %c0_i32, %c0_i32_0 : i32, i32
  }
  func.func @transform_1(%arg0: i32, %arg1: memref<1xi32, #tpu.memory_space<smem>>) -> (i32, i32) {
    %c0_i32 = arith.constant 0 : i32
    %c0_i32_0 = arith.constant 0 : i32
    %c0_i32_1 = arith.constant 0 : i32
    return %c0_i32, %c0_i32_0 : i32, i32
  }
  func.func @transform_2(%arg0: i32, %arg1: memref<1xi32, #tpu.memory_space<smem>>) -> (i32, i32) {
    %c0_i32 = arith.constant 0 : i32
    %c0_i32_0 = arith.constant 0 : i32
    %c0_i32_1 = arith.constant 0 : i32
    return %c0_i32, %c0_i32_0 : i32, i32
  }
  func.func @transform_3(%arg0: i32, %arg1: memref<1xi32, #tpu.memory_space<smem>>) -> (i32, i32) {
    %c0_i32 = arith.constant 0 : i32
    %c0_i32_0 = arith.constant 0 : i32
    %c0_i32_1 = arith.constant 0 : i32
    return %c0_i32, %c0_i32_0 : i32, i32
  }
  func.func @transform_4(%arg0: i32, %arg1: memref<1xi32, #tpu.memory_space<smem>>) -> (i32, i32) {
    %c0_i32 = arith.constant 0 : i32
    %c0_i32_0 = arith.constant 0 : i32
    %c0_i32_1 = arith.constant 0 : i32
    return %c0_i32, %c0_i32_0 : i32, i32
  }
  func.func @transform_5(%arg0: i32, %arg1: memref<1xi32, #tpu.memory_space<smem>>) -> (i32, i32) {
    %c0_i32 = arith.constant 0 : i32
    %c0_i32_0 = arith.constant 0 : i32
    %c0_i32_1 = arith.constant 0 : i32
    return %c0_i32, %c0_i32_0 : i32, i32
  }
  func.func @transform_6(%arg0: i32, %arg1: memref<1xi32, #tpu.memory_space<smem>>) -> (i32, i32) {
    %c0_i32 = arith.constant 0 : i32
    %c0_i32_0 = arith.constant 0 : i32
    %c0_i32_1 = arith.constant 0 : i32
    return %c0_i32, %c0_i32_0 : i32, i32
  }
}

</mosaic_0001>

<llo_original>
// kernel: tpu_custom_call.1
$region0: #{tpu_custom_call.1}
  #allocation0 [shape = 'u32[]', space=smem, size = 0x4, offset = 0x4, fixed_abs, tag = 'smem constant byte address 0x4 - core index']
  #allocation1 [shape = 'u32[144,128]{1,0:T(1,128)}', space=vmem, size = 0x12000, scoped, tag = 'internal scratch']
  #allocation2 [shape = 's32[1]{0}', space=sflag, size = 0x4, scoped, tag = 'scoped memory for tpu_custom_call.1']
  #allocation3 [shape = 's32[1]{0:T(128)S(6)}', space=smem, size = 0x200, scoped, tag = 'prefetched SMEM operand 0']
  %s0 = inlined_call_operand.<no memory space> [shape: s32[1], index: 0, kind: input, shape index: {}]
  %s1 = inlined_call_operand.hbm [shape: f32[16,128], index: 1, kind: input, shape index: {}]
  %s2 = inlined_call_operand.hbm [shape: f32[16,128], index: 2, kind: input, shape index: {}]
  %s3 = inlined_call_operand.hbm [shape: f32[128,128], index: 3, kind: input, shape index: {}]
  %s4 = inlined_call_operand.hbm [shape: f32[128,128], index: 4, kind: input, shape index: {}]
  %s5 = inlined_call_operand.vmem [shape: f32[1,128], index: 5, kind: input, shape index: {}]
  %s6 = inlined_call_operand.hbm [shape: f32[16,128], index: 6, kind: output, shape index: {0}]
  %s7 = inlined_call_operand.hbm [shape: f32[128,128], index: 7, kind: output, shape index: {1}]
  %8 = xla_tuple %s6, %s7
  %s9 = sld [smem:[#allocation0]]
  $region54: #{tpu_custom_call.1} parent=0
    _
  %s11 = ssub.s32 1, %s9
  %s12 = scalar_select 0, %s11, %s9
  %13 = sst [smem:[#allocation3]] %s0
  $region1: #{tpu_custom_call.1} parent=0
    #allocation4 [shape = 'u8[8192]{0}', space=vmem, size = 0x2000, scoped, tag = 'input window, operand 1, single buffered']
    #allocation5 [shape = 's32[1]{0}', space=sflag, size = 0x4, scoped, tag = 'scoped memory for tpu_custom_call.1']
    #allocation6 [shape = 's32[1]{0}', space=sflag, size = 0x4, scoped, tag = 'scoped memory for tpu_custom_call.1']
    #allocation7 [shape = 'u8[8192]{0}', space=vmem, size = 0x2000, scoped, tag = 'input window, operand 2, single buffered']
    #allocation8 [shape = 's32[1]{0}', space=sflag, size = 0x4, scoped, tag = 'scoped memory for tpu_custom_call.1']
    #allocation9 [shape = 'u8[65536]{0}', space=vmem, size = 0x10000, scoped, tag = 'input window, operand 3, single buffered']
    #allocation10 [shape = 'u8[65536]{0}', space=vmem, size = 0x10000, scoped, tag = 'input window, operand 4, single buffered']
    #allocation11 [shape = 's32[1]{0}', space=sflag, size = 0x4, scoped, tag = 'scoped memory for tpu_custom_call.1']
    #allocation12 [shape = 'u8[8192]{0}', space=vmem, size = 0x2000, scoped, tag = 'output window, operand 0, single buffered']
    #allocation13 [shape = 'u8[65536]{0}', space=vmem, size = 0x10000, scoped, tag = 'output window, operand 1, single buffered']
    #allocation14 [shape = 's32[1]{0}', space=sflag, size = 0x4, scoped, tag = 'scoped memory for tpu_custom_call.1']
    %14 = vsyncpa [#allocation5], 0
    %15 = vsyncpa [#allocation8], 0
    %16 = vsyncpa [#allocation11], 0
    %17 = vsyncpa [#allocation6], 0
    %18 = vsyncpa [#allocation14], 0
    // Predicated region
    $region2: #{tpu_custom_call.1} parent=1 // pred_check
      _
    $region3: #{tpu_custom_call.1} parent=1 // pred_check_branch
      %20 = sbr.rel (0) target = $region5
    $region4: #{tpu_custom_call.1} parent=1 // pred_region
      %s22 = ssub.s32 256, 256
      %23 = vsyncadd [#allocation5], %s22
      %s24 = sshll.u32 [#allocation4], 4
      %s25 = int_to_ptr.vmem [resolvable:$true] %s24
      %30 = dma.hbm_to_vmem [thread:$0]  %s1, 256, %s25, [#allocation5], 128, 128, 8
    $region5: #{tpu_custom_call.1} parent=1 // pred_fallthru
      _
    // Predicated region
    $region6: #{tpu_custom_call.1} parent=1 // pred_check
      _
    $region7: #{tpu_custom_call.1} parent=1 // pred_check_branch
      %32 = sbr.rel (0) target = $region9
    $region8: #{tpu_custom_call.1} parent=1 // pred_region
      %s34 = ssub.s32 256, 256
      %35 = vsyncadd [#allocation8], %s34
      %s36 = sshll.u32 [#allocation7], 4
      %s37 = int_to_ptr.vmem [resolvable:$true] %s36
      %42 = dma.hbm_to_vmem [thread:$0]  %s2, 256, %s37, [#allocation8], 128, 128, 8
    $region9: #{tpu_custom_call.1} parent=1 // pred_fallthru
      _
    // Predicated region
    $region10: #{tpu_custom_call.1} parent=1 // pred_check
      _
    $region11: #{tpu_custom_call.1} parent=1 // pred_check_branch
      %44 = sbr.rel (0) target = $region13
    $region12: #{tpu_custom_call.1} parent=1 // pred_region
      %s46 = ssub.s32 2048, 2048
      %47 = vsyncadd [#allocation8], %s46
      %s48 = sshll.u32 [#allocation9], 4
      %s49 = int_to_ptr.vmem [resolvable:$true] %s48
      %54 = dma.hbm_to_vmem [thread:$0]  %s3, 2048, %s49, [#allocation8], 128, 128, 8
    $region13: #{tpu_custom_call.1} parent=1 // pred_fallthru
      _
    // Predicated region
    $region14: #{tpu_custom_call.1} parent=1 // pred_check
      _
    $region15: #{tpu_custom_call.1} parent=1 // pred_check_branch
      %56 = sbr.rel (0) target = $region17
    $region16: #{tpu_custom_call.1} parent=1 // pred_region
      %s58 = ssub.s32 2048, 2048
      %59 = vsyncadd [#allocation11], %s58
      %s60 = sshll.u32 [#allocation10], 4
      %s61 = int_to_ptr.vmem [resolvable:$true] %s60
      %66 = dma.hbm_to_vmem [thread:$0]  %s4, 2048, %s61, [#allocation11], 128, 128, 8
    $region17: #{tpu_custom_call.1} parent=1 // pred_fallthru
      _
    // Predicated region
    $region18: #{tpu_custom_call.1} parent=1 // pred_check
      _
    $region19: #{tpu_custom_call.1} parent=1 // pred_check_branch
      %68 = sbr.rel (0) target = $region21
    $region20: #{tpu_custom_call.1} parent=1 // pred_region
      _
    $region21: #{tpu_custom_call.1} parent=1 // pred_fallthru
      _
    // Predicated region
    $region22: #{tpu_custom_call.1} parent=1 // pred_check
      _
    $region23: #{tpu_custom_call.1} parent=1 // pred_check_branch
      %70 = sbr.rel (0) target = $region25
    $region24: #{tpu_custom_call.1} parent=1 // pred_region
      %71 = dma.done [#allocation5], 256
    $region25: #{tpu_custom_call.1} parent=1 // pred_fallthru
      _
    // Predicated region
    $region26: #{tpu_custom_call.1} parent=1 // pred_check
      _
    $region27: #{tpu_custom_call.1} parent=1 // pred_check_branch
      %73 = sbr.rel (0) target = $region29
    $region28: #{tpu_custom_call.1} parent=1 // pred_region
      %74 = dma.done [#allocation8], 256
    $region29: #{tpu_custom_call.1} parent=1 // pred_fallthru
      _
    // Predicated region
    $region30: #{tpu_custom_call.1} parent=1 // pred_check
      _
    $region31: #{tpu_custom_call.1} parent=1 // pred_check_branch
      %76 = sbr.rel (0) target = $region33
    $region32: #{tpu_custom_call.1} parent=1 // pred_region
      %77 = dma.done [#allocation8], 2048
    $region33: #{tpu_custom_call.1} parent=1 // pred_fallthru
      _
    // Predicated region
    $region34: #{tpu_custom_call.1} parent=1 // pred_check
      _
    $region35: #{tpu_custom_call.1} parent=1 // pred_check_branch
      %79 = sbr.rel (0) target = $region37
    $region36: #{tpu_custom_call.1} parent=1 // pred_region
      %80 = dma.done [#allocation11], 2048
    $region37: #{tpu_custom_call.1} parent=1 // pred_fallthru
      _
    %v81 = vld [vmem:[#allocation4] sm:$0xff]
    %v82 = vld [vmem:[#allocation4 + $0x8] sm:$0xff]
    %v83 = vld [vmem:[#allocation10] sm:$0xff]
    %v84 = vld [vmem:[#allocation10 + $0x8] sm:$0xff]
    %v85 = vld [vmem:[#allocation10 + $0x10] sm:$0xff]
    %v86 = vld [vmem:[#allocation10 + $0x18] sm:$0xff]
    %v87 = vld [vmem:[#allocation10 + $0x20] sm:$0xff]
    %v88 = vld [vmem:[#allocation10 + $0x28] sm:$0xff]
    %v89 = vld [vmem:[#allocation10 + $0x30] sm:$0xff]
    %v90 = vld [vmem:[#allocation10 + $0x38] sm:$0xff]
    %v91 = vld [vmem:[#allocation10 + $0x40] sm:$0xff]
    %v92 = vld [vmem:[#allocation10 + $0x48] sm:$0xff]
    %v93 = vld [vmem:[#allocation10 + $0x50] sm:$0xff]
    %v94 = vld [vmem:[#allocation10 + $0x58] sm:$0xff]
    %v95 = vld [vmem:[#allocation10 + $0x60] sm:$0xff]
    %v96 = vld [vmem:[#allocation10 + $0x68] sm:$0xff]
    %v97 = vld [vmem:[#allocation10 + $0x70] sm:$0xff]
    %v98 = vld [vmem:[#allocation10 + $0x78] sm:$0xff]
    %v99 = vld [vmem:[%s5] sm:$0x1]
    %v100 = vld [vmem:[#allocation9] sm:$0xff]
    %v101 = vld [vmem:[#allocation9 + $0x8] sm:$0xff]
    %v102 = vld [vmem:[#allocation9 + $0x10] sm:$0xff]
    %v103 = vld [vmem:[#allocation9 + $0x18] sm:$0xff]
    %v104 = vld [vmem:[#allocation9 + $0x20] sm:$0xff]
    %v105 = vld [vmem:[#allocation9 + $0x28] sm:$0xff]
    %v106 = vld [vmem:[#allocation9 + $0x30] sm:$0xff]
    %v107 = vld [vmem:[#allocation9 + $0x38] sm:$0xff]
    %v108 = vld [vmem:[#allocation9 + $0x40] sm:$0xff]
    %v109 = vld [vmem:[#allocation9 + $0x48] sm:$0xff]
    %v110 = vld [vmem:[#allocation9 + $0x50] sm:$0xff]
    %v111 = vld [vmem:[#allocation9 + $0x58] sm:$0xff]
    %v112 = vld [vmem:[#allocation9 + $0x60] sm:$0xff]
    %v113 = vld [vmem:[#allocation9 + $0x68] sm:$0xff]
    %v114 = vld [vmem:[#allocation9 + $0x70] sm:$0xff]
    %v115 = vld [vmem:[#allocation9 + $0x78] sm:$0xff]
    %116 = vmatprep.subr.mxu0 0.0
    %117 = vmatpush1.msra.mxu0 %v115
    %118 = vmatprep.subr.mxu0 0.0
    %119 = vmatpush1.msra.mxu0 %v114
    %120 = vmatprep.subr.mxu0 0.0
    %121 = vmatpush1.msra.mxu0 %v113
    %122 = vmatprep.subr.mxu0 0.0
    %123 = vmatpush1.msra.mxu0 %v112
    %124 = vmatprep.subr.mxu0 0.0
    %125 = vmatpush1.msra.mxu0 %v111
    %126 = vmatprep.subr.mxu0 0.0
    %127 = vmatpush1.msra.mxu0 %v110
    %128 = vmatprep.subr.mxu0 0.0
    %129 = vmatpush1.msra.mxu0 %v109
    %130 = vmatprep.subr.mxu0 0.0
    %131 = vmatpush1.msra.mxu0 %v108
    %132 = vmatprep.subr.mxu0 0.0
    %133 = vmatpush1.msra.mxu0 %v107
    %134 = vmatprep.subr.mxu0 0.0
    %135 = vmatpush1.msra.mxu0 %v106
    %136 = vmatprep.subr.mxu0 0.0
    %137 = vmatpush1.msra.mxu0 %v105
    %138 = vmatprep.subr.mxu0 0.0
    %139 = vmatpush1.msra.mxu0 %v104
    %140 = vmatprep.subr.mxu0 0.0
    %141 = vmatpush1.msra.mxu0 %v103
    %142 = vmatprep.subr.mxu0 0.0
    %143 = vmatpush1.msra.mxu0 %v102
    %144 = vmatprep.subr.mxu0 0.0
    %145 = vmatpush1.msra.mxu0 %v101
    %146 = vmatprep.subr.mxu0 0.0
    %147 = vmatpush1.msra.mxu0 %v100
    %148 = vmatprep.subr.mxu0 0.0
    %149 = vmatpush2.msra.mxu0 0.0
    %150 = vmatprep.subr.mxu0 0.0
    %151 = vmatpush2.msra.mxu0 0.0
    %152 = vmatprep.subr.mxu0 0.0
    %153 = vmatpush2.msra.mxu0 0.0
    %154 = vmatprep.subr.mxu0 0.0
    %155 = vmatpush2.msra.mxu0 0.0
    %156 = vmatprep.subr.mxu0 0.0
    %157 = vmatpush2.msra.mxu0 0.0
    %158 = vmatprep.subr.mxu0 0.0
    %159 = vmatpush2.msra.mxu0 0.0
    %160 = vmatprep.subr.mxu0 0.0
    %161 = vmatpush2.msra.mxu0 0.0
    %162 = vmatprep.subr.mxu0 0.0
    %163 = vmatpush2.msra.mxu0 0.0
    %164 = vmatprep.subr.mxu0 0.0
    %165 = vmatpush2.msra.mxu0 0.0
    %166 = vmatprep.subr.mxu0 0.0
    %167 = vmatpush2.msra.mxu0 0.0
    %168 = vmatprep.subr.mxu0 0.0
    %169 = vmatpush2.msra.mxu0 0.0
    %170 = vmatprep.subr.mxu0 0.0
    %171 = vmatpush2.msra.mxu0 0.0
    %172 = vmatprep.subr.mxu0 0.0
    %173 = vmatpush2.msra.mxu0 0.0
    %174 = vmatprep.subr.mxu0 0.0
    %175 = vmatpush2.msra.mxu0 0.0
    %176 = vmatprep.subr.mxu0 0.0
    %177 = vmatpush2.msra.mxu0 0.0
    %178 = vmatprep.subr.mxu0 0.0
    %179 = vmatpush2.msra.mxu0 0.0
    %180 = vmatprep.mubr.f32.mxu0 0.0
    %181 = vmatmul.mubr.f32.gmra.mxu0 %v81
    %v182 = vpop.f32.mrf.mxu0
    %v183 = vadd.f32 0.0, %v182
    %v184 = vpop.f32.mrf.mxu0
    %185 = vmatprep.mubr.f32.mxu0 0.0
    %186 = vmatmul.mubr.f32.gmra.mxu0 %v82
    %v187 = vpop.f32.mrf.mxu0
    %v188 = vadd.f32 0.0, %v187
    %v189 = vpop.f32.mrf.mxu0
    %190 = vdwg.mxu0
    %v192 = vlaneseq
    %v193 = vshrl.u32 %v192, 7
    %v194 = vsub.s32 0, %v193
    %v195 = vrot.slane %v99, %v194
    %197 = vmatprep.subr.mxu0 0.0
    %198 = vmatpush1.msra.mxu0 %v98
    %199 = vmatprep.subr.mxu0 0.0
    %200 = vmatpush1.msra.mxu0 %v97
    %201 = vmatprep.subr.mxu0 0.0
    %202 = vmatpush1.msra.mxu0 %v96
    %203 = vmatprep.subr.mxu0 0.0
    %204 = vmatpush1.msra.mxu0 %v95
    %205 = vmatprep.subr.mxu0 0.0
    %206 = vmatpush1.msra.mxu0 %v94
    %207 = vmatprep.subr.mxu0 0.0
    %208 = vmatpush1.msra.mxu0 %v93
    %209 = vmatprep.subr.mxu0 0.0
    %210 = vmatpush1.msra.mxu0 %v92
    %211 = vmatprep.subr.mxu0 0.0
    %212 = vmatpush1.msra.mxu0 %v91
    %213 = vmatprep.subr.mxu0 0.0
    %214 = vmatpush1.msra.mxu0 %v90
    %215 = vmatprep.subr.mxu0 0.0
    %216 = vmatpush1.msra.mxu0 %v89
    %217 = vmatprep.subr.mxu0 0.0
    %218 = vmatpush1.msra.mxu0 %v88
    %219 = vmatprep.subr.mxu0 0.0
    %220 = vmatpush1.msra.mxu0 %v87
    %221 = vmatprep.subr.mxu0 0.0
    %222 = vmatpush1.msra.mxu0 %v86
    %223 = vmatprep.subr.mxu0 0.0
    %224 = vmatpush1.msra.mxu0 %v85
    %225 = vmatprep.subr.mxu0 0.0
    %226 = vmatpush1.msra.mxu0 %v84
    %227 = vmatprep.subr.mxu0 0.0
    %228 = vmatpush1.msra.mxu0 %v83
    %229 = vmatprep.subr.mxu0 0.0
    %230 = vmatpush2.msra.mxu0 0.0
    %231 = vmatprep.subr.mxu0 0.0
    %232 = vmatpush2.msra.mxu0 0.0
    %233 = vmatprep.subr.mxu0 0.0
    %234 = vmatpush2.msra.mxu0 0.0
    %235 = vmatprep.subr.mxu0 0.0
    %236 = vmatpush2.msra.mxu0 0.0
    %237 = vmatprep.subr.mxu0 0.0
    %238 = vmatpush2.msra.mxu0 0.0
    %239 = vmatprep.subr.mxu0 0.0
    %240 = vmatpush2.msra.mxu0 0.0
    %241 = vmatprep.subr.mxu0 0.0
    %242 = vmatpush2.msra.mxu0 0.0
    %243 = vmatprep.subr.mxu0 0.0
    %244 = vmatpush2.msra.mxu0 0.0
    %245 = vmatprep.subr.mxu0 0.0
    %246 = vmatpush2.msra.mxu0 0.0
    %247 = vmatprep.subr.mxu0 0.0
    %248 = vmatpush2.msra.mxu0 0.0
    %249 = vmatprep.subr.mxu0 0.0
    %250 = vmatpush2.msra.mxu0 0.0
    %251 = vmatprep.subr.mxu0 0.0
    %252 = vmatpush2.msra.mxu0 0.0
    %253 = vmatprep.subr.mxu0 0.0
    %254 = vmatpush2.msra.mxu0 0.0
    %255 = vmatprep.subr.mxu0 0.0
    %256 = vmatpush2.msra.mxu0 0.0
    %257 = vmatprep.subr.mxu0 0.0
    %258 = vmatpush2.msra.mxu0 0.0
    %259 = vmatprep.subr.mxu0 0.0
    %260 = vmatpush2.msra.mxu0 0.0
    %261 = vmatprep.mubr.f32.mxu0 0.0
    %262 = vmatmul.mubr.f32.gmra.mxu0 %v183
    %v263 = vpop.f32.mrf.mxu0
    %v264 = vadd.f32 %v195, %v263
    %v265 = vpop.f32.mrf.mxu0
    %266 = vmatprep.mubr.f32.mxu0 0.0
    %267 = vmatmul.mubr.f32.gmra.mxu0 %v188
    %v268 = vpop.f32.mrf.mxu0
    %v269 = vadd.f32 %v195, %v268
    %v270 = vpop.f32.mrf.mxu0
    %271 = vdwg.mxu0
    %vm272 = vcmp.ge.f32.partialorder %v264, 0.0
    %vm273 = vcmp.ge.f32.partialorder %v269, 0.0
    %v274 = vmul.f32 %v264, 0.2
    %v275 = vmul.f32 %v269, 0.2
    %v276 = vsel %vm272, %v264, %v274
    %v277 = vsel %vm273, %v269, %v275
    %v278 = vld [vmem:[#allocation7] sm:$0xff]
    %v279 = vld [vmem:[#allocation7 + $0x8] sm:$0xff]
    %280 = vmatprep.subr.mxu0 0.0
    %281 = vmatpush1.msra.mxu0 %v98
    %282 = vmatprep.subr.mxu0 0.0
    %283 = vmatpush1.msra.mxu0 %v97
    %284 = vmatprep.subr.mxu0 0.0
    %285 = vmatpush1.msra.mxu0 %v96
    %286 = vmatprep.subr.mxu0 0.0
    %287 = vmatpush1.msra.mxu0 %v95
    %288 = vmatprep.subr.mxu0 0.0
    %289 = vmatpush1.msra.mxu0 %v94
    %290 = vmatprep.subr.mxu0 0.0
    %291 = vmatpush1.msra.mxu0 %v93
    %292 = vmatprep.subr.mxu0 0.0
    %293 = vmatpush1.msra.mxu0 %v92
    %294 = vmatprep.subr.mxu0 0.0
    %295 = vmatpush1.msra.mxu0 %v91
    %296 = vmatprep.subr.mxu0 0.0
    %297 = vmatpush1.msra.mxu0 %v90
    %298 = vmatprep.subr.mxu0 0.0
    %299 = vmatpush1.msra.mxu0 %v89
    %300 = vmatprep.subr.mxu0 0.0
    %301 = vmatpush1.msra.mxu0 %v88
    %302 = vmatprep.subr.mxu0 0.0
    %303 = vmatpush1.msra.mxu0 %v87
    %304 = vmatprep.subr.mxu0 0.0
    %305 = vmatpush1.msra.mxu0 %v86
    %306 = vmatprep.subr.mxu0 0.0
    %307 = vmatpush1.msra.mxu0 %v85
    %308 = vmatprep.subr.mxu0 0.0
    %309 = vmatpush1.msra.mxu0 %v84
    %310 = vmatprep.subr.mxu0 0.0
    %311 = vmatpush1.msra.mxu0 %v83
    %312 = vmatprep.subr.mxu0 0.0
    %313 = vmatpush2.msra.mxu0 0.0
    %314 = vmatprep.subr.mxu0 0.0
    %315 = vmatpush2.msra.mxu0 0.0
    %316 = vmatprep.subr.mxu0 0.0
    %317 = vmatpush2.msra.mxu0 0.0
    %318 = vmatprep.subr.mxu0 0.0
    %319 = vmatpush2.msra.mxu0 0.0
    %320 = vmatprep.subr.mxu0 0.0
    %321 = vmatpush2.msra.mxu0 0.0
    %322 = vmatprep.subr.mxu0 0.0
    %323 = vmatpush2.msra.mxu0 0.0
    %324 = vmatprep.subr.mxu0 0.0
    %325 = vmatpush2.msra.mxu0 0.0
    %326 = vmatprep.subr.mxu0 0.0
    %327 = vmatpush2.msra.mxu0 0.0
    %328 = vmatprep.subr.mxu0 0.0
    %329 = vmatpush2.msra.mxu0 0.0
    %330 = vmatprep.subr.mxu0 0.0
    %331 = vmatpush2.msra.mxu0 0.0
    %332 = vmatprep.subr.mxu0 0.0
    %333 = vmatpush2.msra.mxu0 0.0
    %334 = vmatprep.subr.mxu0 0.0
    %335 = vmatpush2.msra.mxu0 0.0
    %336 = vmatprep.subr.mxu0 0.0
    %337 = vmatpush2.msra.mxu0 0.0
    %338 = vmatprep.subr.mxu0 0.0
    %339 = vmatpush2.msra.mxu0 0.0
    %340 = vmatprep.subr.mxu0 0.0
    %341 = vmatpush2.msra.mxu0 0.0
    %342 = vmatprep.subr.mxu0 0.0
    %343 = vmatpush2.msra.mxu0 0.0
    %344 = vmatprep.mubr.f32.mxu0 0.0
    %345 = vmatmul.mubr.f32.gmra.mxu0 %v278
    %v346 = vpop.f32.mrf.mxu0
    %v347 = vadd.f32 0.0, %v346
    %v348 = vpop.f32.mrf.mxu0
    %349 = vmatprep.mubr.f32.mxu0 0.0
    %350 = vmatmul.mubr.f32.gmra.mxu0 %v279
    %v351 = vpop.f32.mrf.mxu0
    %v352 = vadd.f32 0.0, %v351
    %v353 = vpop.f32.mrf.mxu0
    %354 = vdwg.mxu0
    %355 = vxpose.xlu0.b32.start [1/16] %v81, 128
    %356 = vxpose.xlu0.b32.cont [2/16] %v82, 128
    %357 = vxpose.xlu0.b32.cont [3/16] 0.0, 128
    %358 = vxpose.xlu0.b32.cont [4/16] 0.0, 128
    %359 = vxpose.xlu0.b32.cont [5/16] 0.0, 128
    %360 = vxpose.xlu0.b32.cont [6/16] 0.0, 128
    %361 = vxpose.xlu0.b32.cont [7/16] 0.0, 128
    %362 = vxpose.xlu0.b32.cont [8/16] 0.0, 128
    %363 = vxpose.xlu0.b32.cont [9/16] 0.0, 128
    %364 = vxpose.xlu0.b32.cont [10/16] 0.0, 128
    %365 = vxpose.xlu0.b32.cont [11/16] 0.0, 128
    %366 = vxpose.xlu0.b32.cont [12/16] 0.0, 128
    %367 = vxpose.xlu0.b32.cont [13/16] 0.0, 128
    %368 = vxpose.xlu0.b32.cont [14/16] 0.0, 128
    %369 = vxpose.xlu0.b32.cont [15/16] 0.0, 128
    %370 = vxpose.xlu0.b32.end [16/16] 0.0, 128
    %v371 = vpop.trf.xlu0
    %v372 = vpop.trf.xlu0
    %v373 = vpop.trf.xlu0
    %v374 = vpop.trf.xlu0
    %v375 = vpop.trf.xlu0
    %v376 = vpop.trf.xlu0
    %v377 = vpop.trf.xlu0
    %v378 = vpop.trf.xlu0
    %v379 = vpop.trf.xlu0
    %v380 = vpop.trf.xlu0
    %v381 = vpop.trf.xlu0
    %v382 = vpop.trf.xlu0
    %v383 = vpop.trf.xlu0
    %v384 = vpop.trf.xlu0
    %v385 = vpop.trf.xlu0
    %v386 = vpop.trf.xlu0
    %vm387 = vcmask 130048
    %v389 = vsel %vm387, %v371, 0
    %v392 = vsel %vm387, %v372, 0
    %v395 = vsel %vm387, %v373, 0
    %v398 = vsel %vm387, %v374, 0
    %v401 = vsel %vm387, %v375, 0
    %v404 = vsel %vm387, %v376, 0
    %v407 = vsel %vm387, %v377, 0
    %v410 = vsel %vm387, %v378, 0
    %v413 = vsel %vm387, %v379, 0
    %v416 = vsel %vm387, %v380, 0
    %v419 = vsel %vm387, %v381, 0
    %v422 = vsel %vm387, %v382, 0
    %v425 = vsel %vm387, %v383, 0
    %v428 = vsel %vm387, %v384, 0
    %v431 = vsel %vm387, %v385, 0
    %v434 = vsel %vm387, %v386, 0
    %436 = vmatprep.subr.mxu0 0.0
    %437 = vmatpush1.msra.mxu0 0.0
    %438 = vmatprep.subr.mxu0 0.0
    %439 = vmatpush1.msra.mxu0 0.0
    %440 = vmatprep.subr.mxu0 0.0
    %441 = vmatpush1.msra.mxu0 0.0
    %442 = vmatprep.subr.mxu0 0.0
    %443 = vmatpush1.msra.mxu0 0.0
    %444 = vmatprep.subr.mxu0 0.0
    %445 = vmatpush1.msra.mxu0 0.0
    %446 = vmatprep.subr.mxu0 0.0
    %447 = vmatpush1.msra.mxu0 0.0
    %448 = vmatprep.subr.mxu0 0.0
    %449 = vmatpush1.msra.mxu0 0.0
    %450 = vmatprep.subr.mxu0 0.0
    %451 = vmatpush1.msra.mxu0 0.0
    %452 = vmatprep.subr.mxu0 0.0
    %453 = vmatpush1.msra.mxu0 0.0
    %454 = vmatprep.subr.mxu0 0.0
    %455 = vmatpush1.msra.mxu0 0.0
    %456 = vmatprep.subr.mxu0 0.0
    %457 = vmatpush1.msra.mxu0 0.0
    %458 = vmatprep.subr.mxu0 0.0
    %459 = vmatpush1.msra.mxu0 0.0
    %460 = vmatprep.subr.mxu0 0.0
    %461 = vmatpush1.msra.mxu0 0.0
    %462 = vmatprep.subr.mxu0 0.0
    %463 = vmatpush1.msra.mxu0 0.0
    %464 = vmatprep.subr.mxu0 0.0
    %465 = vmatpush1.msra.mxu0 %v352
    %466 = vmatprep.subr.mxu0 0.0
    %467 = vmatpush1.msra.mxu0 %v347
    %468 = vmatprep.subr.mxu0 0.0
    %469 = vmatpush2.msra.mxu0 0.0
    %470 = vmatprep.subr.mxu0 0.0
    %471 = vmatpush2.msra.mxu0 0.0
    %472 = vmatprep.subr.mxu0 0.0
    %473 = vmatpush2.msra.mxu0 0.0
    %474 = vmatprep.subr.mxu0 0.0
    %475 = vmatpush2.msra.mxu0 0.0
    %476 = vmatprep.subr.mxu0 0.0
    %477 = vmatpush2.msra.mxu0 0.0
    %478 = vmatprep.subr.mxu0 0.0
    %479 = vmatpush2.msra.mxu0 0.0
    %480 = vmatprep.subr.mxu0 0.0
    %481 = vmatpush2.msra.mxu0 0.0
    %482 = vmatprep.subr.mxu0 0.0
    %483 = vmatpush2.msra.mxu0 0.0
    %484 = vmatprep.subr.mxu0 0.0
    %485 = vmatpush2.msra.mxu0 0.0
    %486 = vmatprep.subr.mxu0 0.0
    %487 = vmatpush2.msra.mxu0 0.0
    %488 = vmatprep.subr.mxu0 0.0
    %489 = vmatpush2.msra.mxu0 0.0
    %490 = vmatprep.subr.mxu0 0.0
    %491 = vmatpush2.msra.mxu0 0.0
    %492 = vmatprep.subr.mxu0 0.0
    %493 = vmatpush2.msra.mxu0 0.0
    %494 = vmatprep.subr.mxu0 0.0
    %495 = vmatpush2.msra.mxu0 0.0
    %496 = vmatprep.subr.mxu0 0.0
    %497 = vmatpush2.msra.mxu0 0.0
    %498 = vmatprep.subr.mxu0 0.0
    %499 = vmatpush2.msra.mxu0 0.0
    %500 = vmatprep.mubr.f32.mxu0 0.0
    %501 = vmatmul.mubr.f32.gmra.mxu0 %v389
    %v502 = vpop.f32.mrf.mxu0
    %v503 = vadd.f32 %v195, %v502
    %v504 = vpop.f32.mrf.mxu0
    %505 = vmatprep.mubr.f32.mxu0 0.0
    %506 = vmatmul.mubr.f32.gmra.mxu0 %v392
    %v507 = vpop.f32.mrf.mxu0
    %v508 = vadd.f32 %v195, %v507
    %v509 = vpop.f32.mrf.mxu0
    %510 = vmatprep.mubr.f32.mxu0 0.0
    %511 = vmatmul.mubr.f32.gmra.mxu0 %v395
    %v512 = vpop.f32.mrf.mxu0
    %v513 = vadd.f32 %v195, %v512
    %v514 = vpop.f32.mrf.mxu0
    %515 = vmatprep.mubr.f32.mxu0 0.0
    %516 = vmatmul.mubr.f32.gmra.mxu0 %v398
    %v517 = vpop.f32.mrf.mxu0
    %v518 = vadd.f32 %v195, %v517
    %v519 = vpop.f32.mrf.mxu0
    %520 = vmatprep.mubr.f32.mxu0 0.0
    %521 = vmatmul.mubr.f32.gmra.mxu0 %v401
    %v522 = vpop.f32.mrf.mxu0
    %v523 = vadd.f32 %v195, %v522
    %v524 = vpop.f32.mrf.mxu0
    %525 = vmatprep.mubr.f32.mxu0 0.0
    %526 = vmatmul.mubr.f32.gmra.mxu0 %v404
    %v527 = vpop.f32.mrf.mxu0
    %v528 = vadd.f32 %v195, %v527
    %v529 = vpop.f32.mrf.mxu0
    %530 = vmatprep.mubr.f32.mxu0 0.0
    %531 = vmatmul.mubr.f32.gmra.mxu0 %v407
    %v532 = vpop.f32.mrf.mxu0
    %v533 = vadd.f32 %v195, %v532
    %v534 = vpop.f32.mrf.mxu0
    %535 = vmatprep.mubr.f32.mxu0 0.0
    %536 = vmatmul.mubr.f32.gmra.mxu0 %v410
    %v537 = vpop.f32.mrf.mxu0
    %v538 = vadd.f32 %v195, %v537
    %v539 = vpop.f32.mrf.mxu0
    %540 = vmatprep.mubr.f32.mxu0 0.0
    %541 = vmatmul.mubr.f32.gmra.mxu0 %v413
    %v542 = vpop.f32.mrf.mxu0
    %v543 = vadd.f32 %v195, %v542
    %v544 = vpop.f32.mrf.mxu0
    %545 = vmatprep.mubr.f32.mxu0 0.0
    %546 = vmatmul.mubr.f32.gmra.mxu0 %v416
    %v547 = vpop.f32.mrf.mxu0
    %v548 = vadd.f32 %v195, %v547
    %v549 = vpop.f32.mrf.mxu0
    %550 = vmatprep.mubr.f32.mxu0 0.0
    %551 = vmatmul.mubr.f32.gmra.mxu0 %v419
    %v552 = vpop.f32.mrf.mxu0
    %v553 = vadd.f32 %v195, %v552
    %v554 = vpop.f32.mrf.mxu0
    %555 = vmatprep.mubr.f32.mxu0 0.0
    %556 = vmatmul.mubr.f32.gmra.mxu0 %v422
    %v557 = vpop.f32.mrf.mxu0
    %v558 = vadd.f32 %v195, %v557
    %v559 = vpop.f32.mrf.mxu0
    %560 = vmatprep.mubr.f32.mxu0 0.0
    %561 = vmatmul.mubr.f32.gmra.mxu0 %v425
    %v562 = vpop.f32.mrf.mxu0
    %v563 = vadd.f32 %v195, %v562
    %v564 = vpop.f32.mrf.mxu0
    %565 = vmatprep.mubr.f32.mxu0 0.0
    %566 = vmatmul.mubr.f32.gmra.mxu0 %v428
    %v567 = vpop.f32.mrf.mxu0
    %v568 = vadd.f32 %v195, %v567
    %v569 = vpop.f32.mrf.mxu0
    %570 = vmatprep.mubr.f32.mxu0 0.0
    %571 = vmatmul.mubr.f32.gmra.mxu0 %v431
    %v572 = vpop.f32.mrf.mxu0
    %v573 = vadd.f32 %v195, %v572
    %v574 = vpop.f32.mrf.mxu0
    %575 = vmatprep.mubr.f32.mxu0 0.0
    %576 = vmatmul.mubr.f32.gmra.mxu0 %v434
    %v577 = vpop.f32.mrf.mxu0
    %v578 = vadd.f32 %v195, %v577
    %v579 = vpop.f32.mrf.mxu0
    %580 = vdwg.mxu0
    %vm581 = vcmp.ge.f32.partialorder %v503, 0.0
    %vm582 = vcmp.ge.f32.partialorder %v508, 0.0
    %vm583 = vcmp.ge.f32.partialorder %v513, 0.0
    %vm584 = vcmp.ge.f32.partialorder %v518, 0.0
    %vm585 = vcmp.ge.f32.partialorder %v523, 0.0
    %vm586 = vcmp.ge.f32.partialorder %v528, 0.0
    %vm587 = vcmp.ge.f32.partialorder %v533, 0.0
    %vm588 = vcmp.ge.f32.partialorder %v538, 0.0
    %vm589 = vcmp.ge.f32.partialorder %v543, 0.0
    %vm590 = vcmp.ge.f32.partialorder %v548, 0.0
    %vm591 = vcmp.ge.f32.partialorder %v553, 0.0
    %vm592 = vcmp.ge.f32.partialorder %v558, 0.0
    %vm593 = vcmp.ge.f32.partialorder %v563, 0.0
    %vm594 = vcmp.ge.f32.partialorder %v568, 0.0
    %vm595 = vcmp.ge.f32.partialorder %v573, 0.0
    %vm596 = vcmp.ge.f32.partialorder %v578, 0.0
    %v597 = vmul.f32 %v503, 0.2
    %v598 = vmul.f32 %v508, 0.2
    %v599 = vmul.f32 %v513, 0.2
    %v600 = vmul.f32 %v518, 0.2
    %v601 = vmul.f32 %v523, 0.2
    %v602 = vmul.f32 %v528, 0.2
    %v603 = vmul.f32 %v533, 0.2
    %v604 = vmul.f32 %v538, 0.2
    %v605 = vmul.f32 %v543, 0.2
    %v606 = vmul.f32 %v548, 0.2
    %v607 = vmul.f32 %v553, 0.2
    %v608 = vmul.f32 %v558, 0.2
    %v609 = vmul.f32 %v563, 0.2
    %v610 = vmul.f32 %v568, 0.2
    %v611 = vmul.f32 %v573, 0.2
    %v612 = vmul.f32 %v578, 0.2
    %v613 = vsel %vm581, %v503, %v597
    %v614 = vsel %vm582, %v508, %v598
    %v615 = vsel %vm583, %v513, %v599
    %v616 = vsel %vm584, %v518, %v600
    %v617 = vsel %vm585, %v523, %v601
    %v618 = vsel %vm586, %v528, %v602
    %v619 = vsel %vm587, %v533, %v603
    %v620 = vsel %vm588, %v538, %v604
    %v621 = vsel %vm589, %v543, %v605
    %v622 = vsel %vm590, %v548, %v606
    %v623 = vsel %vm591, %v553, %v607
    %v624 = vsel %vm592, %v558, %v608
    %v625 = vsel %vm593, %v563, %v609
    %v626 = vsel %vm594, %v568, %v610
    %v627 = vsel %vm595, %v573, %v611
    %v628 = vsel %vm596, %v578, %v612
    %629 = vmatprep.subr.mxu0 0.0
    %630 = vmatpush1.msra.mxu0 %v628
    %631 = vmatprep.subr.mxu0 0.0
    %632 = vmatpush1.msra.mxu0 %v627
    %633 = vmatprep.subr.mxu0 0.0
    %634 = vmatpush1.msra.mxu0 %v626
    %635 = vmatprep.subr.mxu0 0.0
    %636 = vmatpush1.msra.mxu0 %v625
    %637 = vmatprep.subr.mxu0 0.0
    %638 = vmatpush1.msra.mxu0 %v624
    %639 = vmatprep.subr.mxu0 0.0
    %640 = vmatpush1.msra.mxu0 %v623
    %641 = vmatprep.subr.mxu0 0.0
    %642 = vmatpush1.msra.mxu0 %v622
    %643 = vmatprep.subr.mxu0 0.0
    %644 = vmatpush1.msra.mxu0 %v621
    %645 = vmatprep.subr.mxu0 0.0
    %646 = vmatpush1.msra.mxu0 %v620
    %647 = vmatprep.subr.mxu0 0.0
    %648 = vmatpush1.msra.mxu0 %v619
    %649 = vmatprep.subr.mxu0 0.0
    %650 = vmatpush1.msra.mxu0 %v618
    %651 = vmatprep.subr.mxu0 0.0
    %652 = vmatpush1.msra.mxu0 %v617
    %653 = vmatprep.subr.mxu0 0.0
    %654 = vmatpush1.msra.mxu0 %v616
    %655 = vmatprep.subr.mxu0 0.0
    %656 = vmatpush1.msra.mxu0 %v615
    %657 = vmatprep.subr.mxu0 0.0
    %658 = vmatpush1.msra.mxu0 %v614
    %659 = vmatprep.subr.mxu0 0.0
    %660 = vmatpush1.msra.mxu0 %v613
    %661 = vmatprep.subr.mxu0 0.0
    %662 = vmatpush2.msra.mxu0 0.0
    %663 = vmatprep.subr.mxu0 0.0
    %664 = vmatpush2.msra.mxu0 0.0
    %665 = vmatprep.subr.mxu0 0.0
    %666 = vmatpush2.msra.mxu0 0.0
    %667 = vmatprep.subr.mxu0 0.0
    %668 = vmatpush2.msra.mxu0 0.0
    %669 = vmatprep.subr.mxu0 0.0
    %670 = vmatpush2.msra.mxu0 0.0
    %671 = vmatprep.subr.mxu0 0.0
    %672 = vmatpush2.msra.mxu0 0.0
    %673 = vmatprep.subr.mxu0 0.0
    %674 = vmatpush2.msra.mxu0 0.0
    %675 = vmatprep.subr.mxu0 0.0
    %676 = vmatpush2.msra.mxu0 0.0
    %677 = vmatprep.subr.mxu0 0.0
    %678 = vmatpush2.msra.mxu0 0.0
    %679 = vmatprep.subr.mxu0 0.0
    %680 = vmatpush2.msra.mxu0 0.0
    %681 = vmatprep.subr.mxu0 0.0
    %682 = vmatpush2.msra.mxu0 0.0
    %683 = vmatprep.subr.mxu0 0.0
    %684 = vmatpush2.msra.mxu0 0.0
    %685 = vmatprep.subr.mxu0 0.0
    %686 = vmatpush2.msra.mxu0 0.0
    %687 = vmatprep.subr.mxu0 0.0
    %688 = vmatpush2.msra.mxu0 0.0
    %689 = vmatprep.subr.mxu0 0.0
    %690 = vmatpush2.msra.mxu0 0.0
    %691 = vmatprep.subr.mxu0 0.0
    %692 = vmatpush2.msra.mxu0 0.0
    %693 = vmatprep.mubr.f32.mxu0 0.0
    %694 = vmatmul.mubr.f32.gmra.mxu0 %v81
    %v695 = vpop.f32.mrf.mxu0
    %v696 = vadd.f32 0.0, %v695
    %v697 = vpop.f32.mrf.mxu0
    %698 = vmatprep.mubr.f32.mxu0 0.0
    %699 = vmatmul.mubr.f32.gmra.mxu0 %v82
    %v700 = vpop.f32.mrf.mxu0
    %v701 = vadd.f32 0.0, %v700
    %v702 = vpop.f32.mrf.mxu0
    %703 = vdwg.mxu0
    %704 = vmatprep.subr.mxu0 0.0
    %705 = vmatpush1.msra.mxu0 %v98
    %706 = vmatprep.subr.mxu0 0.0
    %707 = vmatpush1.msra.mxu0 %v97
    %708 = vmatprep.subr.mxu0 0.0
    %709 = vmatpush1.msra.mxu0 %v96
    %710 = vmatprep.subr.mxu0 0.0
    %711 = vmatpush1.msra.mxu0 %v95
    %712 = vmatprep.subr.mxu0 0.0
    %713 = vmatpush1.msra.mxu0 %v94
    %714 = vmatprep.subr.mxu0 0.0
    %715 = vmatpush1.msra.mxu0 %v93
    %716 = vmatprep.subr.mxu0 0.0
    %717 = vmatpush1.msra.mxu0 %v92
    %718 = vmatprep.subr.mxu0 0.0
    %719 = vmatpush1.msra.mxu0 %v91
    %720 = vmatprep.subr.mxu0 0.0
    %721 = vmatpush1.msra.mxu0 %v90
    %722 = vmatprep.subr.mxu0 0.0
    %723 = vmatpush1.msra.mxu0 %v89
    %724 = vmatprep.subr.mxu0 0.0
    %725 = vmatpush1.msra.mxu0 %v88
    %726 = vmatprep.subr.mxu0 0.0
    %727 = vmatpush1.msra.mxu0 %v87
    %728 = vmatprep.subr.mxu0 0.0
    %729 = vmatpush1.msra.mxu0 %v86
    %730 = vmatprep.subr.mxu0 0.0
    %731 = vmatpush1.msra.mxu0 %v85
    %732 = vmatprep.subr.mxu0 0.0
    %733 = vmatpush1.msra.mxu0 %v84
    %734 = vmatprep.subr.mxu0 0.0
    %735 = vmatpush1.msra.mxu0 %v83
    %736 = vmatprep.subr.mxu0 0.0
    %737 = vmatpush2.msra.mxu0 0.0
    %738 = vmatprep.subr.mxu0 0.0
    %739 = vmatpush2.msra.mxu0 0.0
    %740 = vmatprep.subr.mxu0 0.0
    %741 = vmatpush2.msra.mxu0 0.0
    %742 = vmatprep.subr.mxu0 0.0
    %743 = vmatpush2.msra.mxu0 0.0
    %744 = vmatprep.subr.mxu0 0.0
    %745 = vmatpush2.msra.mxu0 0.0
    %746 = vmatprep.subr.mxu0 0.0
    %747 = vmatpush2.msra.mxu0 0.0
    %748 = vmatprep.subr.mxu0 0.0
    %749 = vmatpush2.msra.mxu0 0.0
    %750 = vmatprep.subr.mxu0 0.0
    %751 = vmatpush2.msra.mxu0 0.0
    %752 = vmatprep.subr.mxu0 0.0
    %753 = vmatpush2.msra.mxu0 0.0
    %754 = vmatprep.subr.mxu0 0.0
    %755 = vmatpush2.msra.mxu0 0.0
    %756 = vmatprep.subr.mxu0 0.0
    %757 = vmatpush2.msra.mxu0 0.0
    %758 = vmatprep.subr.mxu0 0.0
    %759 = vmatpush2.msra.mxu0 0.0
    %760 = vmatprep.subr.mxu0 0.0
    %761 = vmatpush2.msra.mxu0 0.0
    %762 = vmatprep.subr.mxu0 0.0
    %763 = vmatpush2.msra.mxu0 0.0
    %764 = vmatprep.subr.mxu0 0.0
    %765 = vmatpush2.msra.mxu0 0.0
    %766 = vmatprep.subr.mxu0 0.0
    %767 = vmatpush2.msra.mxu0 0.0
    %768 = vmatprep.mubr.f32.mxu0 0.0
    %769 = vmatmul.mubr.f32.gmra.mxu0 %v696
    %v770 = vpop.f32.mrf.mxu0
    %v771 = vadd.f32 %v195, %v770
    %v772 = vpop.f32.mrf.mxu0
    %773 = vmatprep.mubr.f32.mxu0 0.0
    %774 = vmatmul.mubr.f32.gmra.mxu0 %v701
    %v775 = vpop.f32.mrf.mxu0
    %v776 = vadd.f32 %v195, %v775
    %v777 = vpop.f32.mrf.mxu0
    %778 = vdwg.mxu0
    %vm779 = vcmp.ge.f32.partialorder %v771, 0.0
    %vm780 = vcmp.ge.f32.partialorder %v776, 0.0
    %v781 = vmul.f32 %v771, 0.2
    %v782 = vmul.f32 %v776, 0.2
    %v783 = vsel %vm779, %v771, %v781
    %v784 = vsel %vm780, %v776, %v782
    %785 = vmatprep.subr.mxu0 0.0
    %786 = vmatpush1.msra.mxu0 %v98
    %787 = vmatprep.subr.mxu0 0.0
    %788 = vmatpush1.msra.mxu0 %v97
    %789 = vmatprep.subr.mxu0 0.0
    %790 = vmatpush1.msra.mxu0 %v96
    %791 = vmatprep.subr.mxu0 0.0
    %792 = vmatpush1.msra.mxu0 %v95
    %793 = vmatprep.subr.mxu0 0.0
    %794 = vmatpush1.msra.mxu0 %v94
    %795 = vmatprep.subr.mxu0 0.0
    %796 = vmatpush1.msra.mxu0 %v93
    %797 = vmatprep.subr.mxu0 0.0
    %798 = vmatpush1.msra.mxu0 %v92
    %799 = vmatprep.subr.mxu0 0.0
    %800 = vmatpush1.msra.mxu0 %v91
    %801 = vmatprep.subr.mxu0 0.0
    %802 = vmatpush1.msra.mxu0 %v90
    %803 = vmatprep.subr.mxu0 0.0
    %804 = vmatpush1.msra.mxu0 %v89
    %805 = vmatprep.subr.mxu0 0.0
    %806 = vmatpush1.msra.mxu0 %v88
    %807 = vmatprep.subr.mxu0 0.0
    %808 = vmatpush1.msra.mxu0 %v87
    %809 = vmatprep.subr.mxu0 0.0
    %810 = vmatpush1.msra.mxu0 %v86
    %811 = vmatprep.subr.mxu0 0.0
    %812 = vmatpush1.msra.mxu0 %v85
    %813 = vmatprep.subr.mxu0 0.0
    %814 = vmatpush1.msra.mxu0 %v84
    %815 = vmatprep.subr.mxu0 0.0
    %816 = vmatpush1.msra.mxu0 %v83
    %817 = vmatprep.subr.mxu0 0.0
    %818 = vmatpush2.msra.mxu0 0.0
    %819 = vmatprep.subr.mxu0 0.0
    %820 = vmatpush2.msra.mxu0 0.0
    %821 = vmatprep.subr.mxu0 0.0
    %822 = vmatpush2.msra.mxu0 0.0
    %823 = vmatprep.subr.mxu0 0.0
    %824 = vmatpush2.msra.mxu0 0.0
    %825 = vmatprep.subr.mxu0 0.0
    %826 = vmatpush2.msra.mxu0 0.0
    %827 = vmatprep.subr.mxu0 0.0
    %828 = vmatpush2.msra.mxu0 0.0
    %829 = vmatprep.subr.mxu0 0.0
    %830 = vmatpush2.msra.mxu0 0.0
    %831 = vmatprep.subr.mxu0 0.0
    %832 = vmatpush2.msra.mxu0 0.0
    %833 = vmatprep.subr.mxu0 0.0
    %834 = vmatpush2.msra.mxu0 0.0
    %835 = vmatprep.subr.mxu0 0.0
    %836 = vmatpush2.msra.mxu0 0.0
    %837 = vmatprep.subr.mxu0 0.0
    %838 = vmatpush2.msra.mxu0 0.0
    %839 = vmatprep.subr.mxu0 0.0
    %840 = vmatpush2.msra.mxu0 0.0
    %841 = vmatprep.subr.mxu0 0.0
    %842 = vmatpush2.msra.mxu0 0.0
    %843 = vmatprep.subr.mxu0 0.0
    %844 = vmatpush2.msra.mxu0 0.0
    %845 = vmatprep.subr.mxu0 0.0
    %846 = vmatpush2.msra.mxu0 0.0
    %847 = vmatprep.subr.mxu0 0.0
    %848 = vmatpush2.msra.mxu0 0.0
    %849 = vmatprep.mubr.f32.mxu0 0.0
    %850 = vmatmul.mubr.f32.gmra.mxu0 %v276
    %v851 = vpop.f32.mrf.mxu0
    %v852 = vadd.f32 0.0, %v851
    %v853 = vpop.f32.mrf.mxu0
    %854 = vmatprep.mubr.f32.mxu0 0.0
    %855 = vmatmul.mubr.f32.gmra.mxu0 %v277
    %v856 = vpop.f32.mrf.mxu0
    %v857 = vadd.f32 0.0, %v856
    %v858 = vpop.f32.mrf.mxu0
    %859 = vdwg.mxu0
    %860 = vmatprep.subr.mxu0 0.0
    %861 = vmatpush1.msra.mxu0 0.0
    %862 = vmatprep.subr.mxu0 0.0
    %863 = vmatpush1.msra.mxu0 0.0
    %864 = vmatprep.subr.mxu0 0.0
    %865 = vmatpush1.msra.mxu0 0.0
    %866 = vmatprep.subr.mxu0 0.0
    %867 = vmatpush1.msra.mxu0 0.0
    %868 = vmatprep.subr.mxu0 0.0
    %869 = vmatpush1.msra.mxu0 0.0
    %870 = vmatprep.subr.mxu0 0.0
    %871 = vmatpush1.msra.mxu0 0.0
    %872 = vmatprep.subr.mxu0 0.0
    %873 = vmatpush1.msra.mxu0 0.0
    %874 = vmatprep.subr.mxu0 0.0
    %875 = vmatpush1.msra.mxu0 0.0
    %876 = vmatprep.subr.mxu0 0.0
    %877 = vmatpush1.msra.mxu0 0.0
    %878 = vmatprep.subr.mxu0 0.0
    %879 = vmatpush1.msra.mxu0 0.0
    %880 = vmatprep.subr.mxu0 0.0
    %881 = vmatpush1.msra.mxu0 0.0
    %882 = vmatprep.subr.mxu0 0.0
    %883 = vmatpush1.msra.mxu0 0.0
    %884 = vmatprep.subr.mxu0 0.0
    %885 = vmatpush1.msra.mxu0 0.0
    %886 = vmatprep.subr.mxu0 0.0
    %887 = vmatpush1.msra.mxu0 0.0
    %888 = vmatprep.subr.mxu0 0.0
    %889 = vmatpush1.msra.mxu0 %v857
    %890 = vmatprep.subr.mxu0 0.0
    %891 = vmatpush1.msra.mxu0 %v852
    %892 = vmatprep.subr.mxu0 0.0
    %893 = vmatpush2.msra.mxu0 0.0
    %894 = vmatprep.subr.mxu0 0.0
    %895 = vmatpush2.msra.mxu0 0.0
    %896 = vmatprep.subr.mxu0 0.0
    %897 = vmatpush2.msra.mxu0 0.0
    %898 = vmatprep.subr.mxu0 0.0
    %899 = vmatpush2.msra.mxu0 0.0
    %900 = vmatprep.subr.mxu0 0.0
    %901 = vmatpush2.msra.mxu0 0.0
    %902 = vmatprep.subr.mxu0 0.0
    %903 = vmatpush2.msra.mxu0 0.0
    %904 = vmatprep.subr.mxu0 0.0
    %905 = vmatpush2.msra.mxu0 0.0
    %906 = vmatprep.subr.mxu0 0.0
    %907 = vmatpush2.msra.mxu0 0.0
    %908 = vmatprep.subr.mxu0 0.0
    %909 = vmatpush2.msra.mxu0 0.0
    %910 = vmatprep.subr.mxu0 0.0
    %911 = vmatpush2.msra.mxu0 0.0
    %912 = vmatprep.subr.mxu0 0.0
    %913 = vmatpush2.msra.mxu0 0.0
    %914 = vmatprep.subr.mxu0 0.0
    %915 = vmatpush2.msra.mxu0 0.0
    %916 = vmatprep.subr.mxu0 0.0
    %917 = vmatpush2.msra.mxu0 0.0
    %918 = vmatprep.subr.mxu0 0.0
    %919 = vmatpush2.msra.mxu0 0.0
    %920 = vmatprep.subr.mxu0 0.0
    %921 = vmatpush2.msra.mxu0 0.0
    %922 = vmatprep.subr.mxu0 0.0
    %923 = vmatpush2.msra.mxu0 0.0
    %924 = vmatprep.mubr.f32.mxu0 0.0
    %925 = vmatmul.mubr.f32.gmra.mxu0 %v389
    %v926 = vpop.f32.mrf.mxu0
    %v927 = vadd.f32 %v195, %v926
    %v928 = vpop.f32.mrf.mxu0
    %929 = vmatprep.mubr.f32.mxu0 0.0
    %930 = vmatmul.mubr.f32.gmra.mxu0 %v392
    %v931 = vpop.f32.mrf.mxu0
    %v932 = vadd.f32 %v195, %v931
    %v933 = vpop.f32.mrf.mxu0
    %934 = vmatprep.mubr.f32.mxu0 0.0
    %935 = vmatmul.mubr.f32.gmra.mxu0 %v395
    %v936 = vpop.f32.mrf.mxu0
    %v937 = vadd.f32 %v195, %v936
    %v938 = vpop.f32.mrf.mxu0
    %939 = vmatprep.mubr.f32.mxu0 0.0
    %940 = vmatmul.mubr.f32.gmra.mxu0 %v398
    %v941 = vpop.f32.mrf.mxu0
    %v942 = vadd.f32 %v195, %v941
    %v943 = vpop.f32.mrf.mxu0
    %944 = vmatprep.mubr.f32.mxu0 0.0
    %945 = vmatmul.mubr.f32.gmra.mxu0 %v401
    %v946 = vpop.f32.mrf.mxu0
    %v947 = vadd.f32 %v195, %v946
    %v948 = vpop.f32.mrf.mxu0
    %949 = vmatprep.mubr.f32.mxu0 0.0
    %950 = vmatmul.mubr.f32.gmra.mxu0 %v404
    %v951 = vpop.f32.mrf.mxu0
    %v952 = vadd.f32 %v195, %v951
    %v953 = vpop.f32.mrf.mxu0
    %954 = vmatprep.mubr.f32.mxu0 0.0
    %955 = vmatmul.mubr.f32.gmra.mxu0 %v407
    %v956 = vpop.f32.mrf.mxu0
    %v957 = vadd.f32 %v195, %v956
    %v958 = vpop.f32.mrf.mxu0
    %959 = vmatprep.mubr.f32.mxu0 0.0
    %960 = vmatmul.mubr.f32.gmra.mxu0 %v410
    %v961 = vpop.f32.mrf.mxu0
    %v962 = vadd.f32 %v195, %v961
    %v963 = vpop.f32.mrf.mxu0
    %964 = vmatprep.mubr.f32.mxu0 0.0
    %965 = vmatmul.mubr.f32.gmra.mxu0 %v413
    %v966 = vpop.f32.mrf.mxu0
    %v967 = vadd.f32 %v195, %v966
    %v968 = vpop.f32.mrf.mxu0
    %969 = vmatprep.mubr.f32.mxu0 0.0
    %970 = vmatmul.mubr.f32.gmra.mxu0 %v416
    %v971 = vpop.f32.mrf.mxu0
    %v972 = vadd.f32 %v195, %v971
    %v973 = vpop.f32.mrf.mxu0
    %974 = vmatprep.mubr.f32.mxu0 0.0
    %975 = vmatmul.mubr.f32.gmra.mxu0 %v419
    %v976 = vpop.f32.mrf.mxu0
    %v977 = vadd.f32 %v195, %v976
    %v978 = vpop.f32.mrf.mxu0
    %979 = vmatprep.mubr.f32.mxu0 0.0
    %980 = vmatmul.mubr.f32.gmra.mxu0 %v422
    %v981 = vpop.f32.mrf.mxu0
    %v982 = vadd.f32 %v195, %v981
    %v983 = vpop.f32.mrf.mxu0
    %984 = vmatprep.mubr.f32.mxu0 0.0
    %985 = vmatmul.mubr.f32.gmra.mxu0 %v425
    %v986 = vpop.f32.mrf.mxu0
    %v987 = vadd.f32 %v195, %v986
    %v988 = vpop.f32.mrf.mxu0
    %989 = vmatprep.mubr.f32.mxu0 0.0
    %990 = vmatmul.mubr.f32.gmra.mxu0 %v428
    %v991 = vpop.f32.mrf.mxu0
    %v992 = vadd.f32 %v195, %v991
    %v993 = vpop.f32.mrf.mxu0
    %994 = vmatprep.mubr.f32.mxu0 0.0
    %995 = vmatmul.mubr.f32.gmra.mxu0 %v431
    %v996 = vpop.f32.mrf.mxu0
    %v997 = vadd.f32 %v195, %v996
    %v998 = vpop.f32.mrf.mxu0
    %999 = vmatprep.mubr.f32.mxu0 0.0
    %1000 = vmatmul.mubr.f32.gmra.mxu0 %v434
    %v1001 = vpop.f32.mrf.mxu0
    %v1002 = vadd.f32 %v195, %v1001
    %v1003 = vpop.f32.mrf.mxu0
    %1004 = vdwg.mxu0
    %vm1005 = vcmp.ge.f32.partialorder %v927, 0.0
    %vm1006 = vcmp.ge.f32.partialorder %v932, 0.0
    %vm1007 = vcmp.ge.f32.partialorder %v937, 0.0
    %vm1008 = vcmp.ge.f32.partialorder %v942, 0.0
    %vm1009 = vcmp.ge.f32.partialorder %v947, 0.0
    %vm1010 = vcmp.ge.f32.partialorder %v952, 0.0
    %vm1011 = vcmp.ge.f32.partialorder %v957, 0.0
    %vm1012 = vcmp.ge.f32.partialorder %v962, 0.0
    %vm1013 = vcmp.ge.f32.partialorder %v967, 0.0
    %vm1014 = vcmp.ge.f32.partialorder %v972, 0.0
    %vm1015 = vcmp.ge.f32.partialorder %v977, 0.0
    %vm1016 = vcmp.ge.f32.partialorder %v982, 0.0
    %vm1017 = vcmp.ge.f32.partialorder %v987, 0.0
    %vm1018 = vcmp.ge.f32.partialorder %v992, 0.0
    %vm1019 = vcmp.ge.f32.partialorder %v997, 0.0
    %vm1020 = vcmp.ge.f32.partialorder %v1002, 0.0
    %v1021 = vmul.f32 %v927, 0.2
    %v1022 = vmul.f32 %v932, 0.2
    %v1023 = vmul.f32 %v937, 0.2
    %v1024 = vmul.f32 %v942, 0.2
    %v1025 = vmul.f32 %v947, 0.2
    %v1026 = vmul.f32 %v952, 0.2
    %v1027 = vmul.f32 %v957, 0.2
    %v1028 = vmul.f32 %v962, 0.2
    %v1029 = vmul.f32 %v967, 0.2
    %v1030 = vmul.f32 %v972, 0.2
    %v1031 = vmul.f32 %v977, 0.2
    %v1032 = vmul.f32 %v982, 0.2
    %v1033 = vmul.f32 %v987, 0.2
    %v1034 = vmul.f32 %v992, 0.2
    %v1035 = vmul.f32 %v997, 0.2
    %v1036 = vmul.f32 %v1002, 0.2
    %v1037 = vsel %vm1005, %v927, %v1021
    %v1038 = vsel %vm1006, %v932, %v1022
    %v1039 = vsel %vm1007, %v937, %v1023
    %v1040 = vsel %vm1008, %v942, %v1024
    %v1041 = vsel %vm1009, %v947, %v1025
    %v1042 = vsel %vm1010, %v952, %v1026
    %v1043 = vsel %vm1011, %v957, %v1027
    %v1044 = vsel %vm1012, %v962, %v1028
    %v1045 = vsel %vm1013, %v967, %v1029
    %v1046 = vsel %vm1014, %v972, %v1030
    %v1047 = vsel %vm1015, %v977, %v1031
    %v1048 = vsel %vm1016, %v982, %v1032
    %v1049 = vsel %vm1017, %v987, %v1033
    %v1050 = vsel %vm1018, %v992, %v1034
    %v1051 = vsel %vm1019, %v997, %v1035
    %v1052 = vsel %vm1020, %v1002, %v1036
    %1053 = vst [vmem:[#allocation12] sm:$0xff] %v783
    %1054 = vst [vmem:[#allocation12 + $0x8] sm:$0xff] %v784
    %1055 = vst [vmem:[#allocation13] sm:$0xff] %v1037
    %1056 = vst [vmem:[#allocation13 + $0x8] sm:$0xff] %v1038
    %1057 = vst [vmem:[#allocation13 + $0x10] sm:$0xff] %v1039
    %1058 = vst [vmem:[#allocation13 + $0x18] sm:$0xff] %v1040
    %1059 = vst [vmem:[#allocation13 + $0x20] sm:$0xff] %v1041
    %1060 = vst [vmem:[#allocation13 + $0x28] sm:$0xff] %v1042
    %1061 = vst [vmem:[#allocation13 + $0x30] sm:$0xff] %v1043
    %1062 = vst [vmem:[#allocation13 + $0x38] sm:$0xff] %v1044
    %1063 = vst [vmem:[#allocation13 + $0x40] sm:$0xff] %v1045
    %1064 = vst [vmem:[#allocation13 + $0x48] sm:$0xff] %v1046
    %1065 = vst [vmem:[#allocation13 + $0x50] sm:$0xff] %v1047
    %1066 = vst [vmem:[#allocation13 + $0x58] sm:$0xff] %v1048
    %1067 = vst [vmem:[#allocation13 + $0x60] sm:$0xff] %v1049
    %1068 = vst [vmem:[#allocation13 + $0x68] sm:$0xff] %v1050
    %1069 = vst [vmem:[#allocation13 + $0x70] sm:$0xff] %v1051
    %1070 = vst [vmem:[#allocation13 + $0x78] sm:$0xff] %v1052
    // Predicated region
    $region38: #{tpu_custom_call.1} parent=1 // pred_check
      _
    $region39: #{tpu_custom_call.1} parent=1 // pred_check_branch
      %1072 = sbr.rel (0) target = $region41
    $region40: #{tpu_custom_call.1} parent=1 // pred_region
      %s1074 = ssub.s32 256, 256
      %1075 = vsyncadd [#allocation6], %s1074
      %s1076 = sshll.u32 [#allocation12], 4
      %s1077 = int_to_ptr.vmem [resolvable:$true] %s1076
      %1082 = dma.vmem_to_hbm [thread:$0]  %s1077, 256, %s6, [#allocation6], 128, 128, 8
    $region41: #{tpu_custom_call.1} parent=1 // pred_fallthru
      _
    // Predicated region
    $region42: #{tpu_custom_call.1} parent=1 // pred_check
      _
    $region43: #{tpu_custom_call.1} parent=1 // pred_check_branch
      %1084 = sbr.rel (0) target = $region45
    $region44: #{tpu_custom_call.1} parent=1 // pred_region
      %s1086 = ssub.s32 2048, 2048
      %1087 = vsyncadd [#allocation14], %s1086
      %s1088 = sshll.u32 [#allocation13], 4
      %s1089 = int_to_ptr.vmem [resolvable:$true] %s1088
      %1094 = dma.vmem_to_hbm [thread:$0]  %s1089, 2048, %s7, [#allocation14], 128, 128, 8
    $region45: #{tpu_custom_call.1} parent=1 // pred_fallthru
      _
    // Predicated region
    $region46: #{tpu_custom_call.1} parent=1 // pred_check
      _
    $region47: #{tpu_custom_call.1} parent=1 // pred_check_branch
      %1096 = sbr.rel (0) target = $region49
    $region48: #{tpu_custom_call.1} parent=1 // pred_region
      %1097 = dma.done [#allocation6], 256
    $region49: #{tpu_custom_call.1} parent=1 // pred_fallthru
      _
    // Predicated region
    $region50: #{tpu_custom_call.1} parent=1 // pred_check
      _
    $region51: #{tpu_custom_call.1} parent=1 // pred_check_branch
      %1099 = sbr.rel (0) target = $region53
    $region52: #{tpu_custom_call.1} parent=1 // pred_region
      %1100 = dma.done [#allocation14], 2048
    $region53: #{tpu_custom_call.1} parent=1 // pred_fallthru
      _
    %1101 = vsyncpa [#allocation5], 1
    %1102 = vsyncpa [#allocation8], 1
    %1103 = vsyncpa [#allocation11], 1
    %1104 = vsyncpa [#allocation6], 1
    %1105 = vsyncpa [#allocation14], 1

</llo_original>
